<compile_context>
chip_gen: v5e
topology: v5e:2x2
jax: 0.10.0
libtpu: 0.0.40
codegen_flags: <defaults>
</compile_context>

<pallas_src>
import jax
import jax.numpy as jnp
from jax.experimental import pallas as pl
from jax.experimental.pallas import tpu as pltpu

EPS = 1e-6
_VMEM_LIMIT_BYTES = 32 * 1024 * 1024     # <= scoped default on v6e/v7x, raises v5e's 16 MiB
_TILE_BUDGET_BYTES = 20 * 1024 * 1024    # double-buffered input footprint budget (headroom)
_MAX_TILE_ROWS = 1024


def _round_up(x, m):
    return ((x + m - 1) // m) * m


def _pick_tile_rows(r, d, itemsize):
    """Largest row tile (multiple of 8) whose 2-input x 2-buffer footprint fits the budget."""
    per_row = 4 * d * itemsize                     # 2 inputs x 2 pipeline buffers
    tile = min(_MAX_TILE_ROWS, max(8, _TILE_BUDGET_BYTES // max(per_row, 1)))
    tile = max(8, (tile // 8) * 8)                 # sublane multiple
    return min(tile, _round_up(r, 8))              # never bigger than the (padded) data


def _dense_kernel(y_ref, t_ref, o_ref):
    """y_ref, t_ref: (TR, D) native dtype; o_ref: (TR, 1) f32."""
    y = y_ref[...].astype(jnp.float32)
    t = t_ref[...].astype(jnp.float32)
    sq = jnp.sum(y * y, axis=-1, keepdims=True)    # (TR, 1)  -- XLU reduction
    dot = jnp.sum(t * y, axis=-1, keepdims=True)   # (TR, 1)
    # 1 / clamp(||y||, eps)  ==  rsqrt(max(||y||^2, eps^2))  -- per-row, EUP slot.
    inv = jax.lax.rsqrt(jnp.maximum(sq, EPS * EPS))
    o_ref[...] = 1.0 - dot * inv


def _index_kernel(y_ref, idx_ref, o_ref):
    """y_ref: (TR, D); idx_ref: (TR, 1) int32 class indices; o_ref: (TR, 1) f32."""
    y = y_ref[...].astype(jnp.float32)
    idx = idx_ref[...]                                               # (TR, 1)
    lane = jax.lax.broadcasted_iota(jnp.int32, y.shape, dimension=1)  # (TR, D)
    picked = jnp.where(lane == idx, y, 0.0)
    dot = jnp.sum(picked, axis=-1, keepdims=True)
    sq = jnp.sum(y * y, axis=-1, keepdims=True)
    inv = jax.lax.rsqrt(jnp.maximum(sq, EPS * EPS))
    o_ref[...] = 1.0 - dot * inv


def _run(kernel, y2, t2, tile, d):
    r = y2.shape[0]
    r_pad = _round_up(r, tile)
    if r_pad != r:                                  # padded rows are sliced off below
        y2 = jnp.pad(y2, ((0, r_pad - r), (0, 0)))
        t2 = jnp.pad(t2, ((0, r_pad - r), (0, 0)))
    grid = r_pad // tile
    t_last = t2.shape[1]

    out = pl.pallas_call(
        kernel,
        out_shape=jax.ShapeDtypeStruct((r_pad, 1), jnp.float32),
        grid_spec=pltpu.PrefetchScalarGridSpec(
            num_scalar_prefetch=0,
            grid=(grid,),
            in_specs=[
                pl.BlockSpec((tile, d), lambda i: (i, 0)),
                pl.BlockSpec((tile, t_last), lambda i: (i, 0)),
            ],
            out_specs=pl.BlockSpec((tile, 1), lambda i: (i, 0)),
        ),
        compiler_params=pltpu.CompilerParams(
            dimension_semantics=("parallel",),      # shards rows across v7x's 2 TCs
            vmem_limit_bytes=_VMEM_LIMIT_BYTES,
        ),
    )(y2, t2)
    return out[:r, 0]


def cosine_loss(y, target, *, one_hot=True, reduction="none", tile_rows=None):
    """y: (..., D). one_hot=True: target (..., D) dense.  one_hot=False: integer indices (...,)/(...,1)."""
    *lead, d = y.shape
    r = 1
    for s in lead:
        r *= int(s)
    y2 = y.reshape(r, d)                            # native dtype; cast happens in-kernel

    if tile_rows is None:
        tile = _pick_tile_rows(r, d, y2.dtype.itemsize)
    else:
        tile = max(8, (int(tile_rows) // 8) * 8)

    if one_hot:
        assert target.shape == y.shape
        t2 = target.reshape(r, d)
        loss = _run(_dense_kernel, y2, t2, tile, d)
    else:
        # torch path: scatter indices into a one-hot -- done in-kernel instead.
        idx = target.reshape(r, 1).astype(jnp.int32)
        loss = _run(_index_kernel, y2, idx, tile, d)

    loss = loss.reshape(tuple(lead))
    if reduction == "none":
        return loss
    elif reduction == "mean":
        return loss.mean()
    elif reduction == "sum":
        return loss.sum()
    raise ValueError(f"unknown reduction: {reduction}")


if __name__ == "__main__":
    key = jax.random.PRNGKey(0)
    k1, k2, k3 = jax.random.split(key, 3)

    # small shapes: batch=2, seq=8, hidden=32
    B, S, D = 2, 8, 32
    y = jax.random.normal(k1, (B, S, D), dtype=jnp.float32)
    idx = jax.random.randint(k2, (B, S), 0, D)
    target = jax.nn.one_hot(idx, D, dtype=jnp.float32)

    # plain-JAX reference (mirrors the torch module)
    norm = jnp.maximum(jnp.linalg.norm(y, axis=-1, keepdims=True), EPS)
    ref = 1.0 - jnp.sum(target * (y / norm), axis=-1)

    # 1) dense one-hot target (one_hot=True, default constructor)
    loss = jax.block_until_ready(cosine_loss(y, target, one_hot=True))
    assert loss.shape == (B, S)
    assert jnp.allclose(loss, ref, atol=1e-5, rtol=1e-5)

    # 2) integer-index target (one_hot=False) -- dense target never streamed from HBM
    loss_idx = jax.block_until_ready(cosine_loss(y, idx, one_hot=False))
    assert loss_idx.shape == (B, S)
    assert jnp.allclose(loss_idx, ref, atol=1e-5, rtol=1e-5)

    # 3) multi-tile grid + row-padding path (forced small tile: r=33 -> 5 grid steps, pad to 40)
    B2, S2 = 3, 11
    y2v = jax.random.normal(k3, (B2, S2, D), dtype=jnp.float32)
    idx2 = jax.random.randint(k2, (B2, S2), 0, D)
    t2v = jax.nn.one_hot(idx2, D, dtype=jnp.float32)
    norm2 = jnp.maximum(jnp.linalg.norm(y2v, axis=-1, keepdims=True), EPS)
    ref2 = 1.0 - jnp.sum(t2v * (y2v / norm2), axis=-1)
    loss2 = jax.block_until_ready(cosine_loss(y2v, t2v, one_hot=True, tile_rows=8))
    assert jnp.allclose(loss2, ref2, atol=1e-5, rtol=1e-5)

    print("KERNEL_OK")
</pallas_src>

<mosaic_0001>
module attributes {stable_mosaic.version = 11 : i64} {
  func.func @_dense_kernel(%arg0: i32, %arg1: memref<16x32xf32, #tpu.memory_space<vmem>>, %arg2: memref<16x32xf32, #tpu.memory_space<vmem>>, %arg3: memref<16x1xf32, #tpu.memory_space<vmem>>) attributes {dimension_semantics = [#tpu.dimension_semantics<parallel>], iteration_bounds = array<i64: 1>, scalar_prefetch = 0 : i64, scratch_operands = 0 : i64, tpu.core_type = #tpu.core_type<tc>, window_params = [{transform_indices = @transform_0, window_bounds = array<i64: 16, 32>}, {transform_indices = @transform_1, window_bounds = array<i64: 16, 32>}, {transform_indices = @transform_2, window_bounds = array<i64: 16, 1>}]} {
    %c0 = arith.constant 0 : index
    %c0_0 = arith.constant 0 : index
    %0 = vector.load %arg1[%c0, %c0_0] : memref<16x32xf32, #tpu.memory_space<vmem>>, vector<16x32xf32>
    %c0_1 = arith.constant 0 : index
    %c0_2 = arith.constant 0 : index
    %1 = vector.load %arg2[%c0_1, %c0_2] : memref<16x32xf32, #tpu.memory_space<vmem>>, vector<16x32xf32>
    %2 = arith.mulf %0, %0 : vector<16x32xf32>
    %cst = arith.constant dense<0.000000e+00> : vector<16xf32>
    %3 = vector.multi_reduction <add>, %2, %cst [1] : vector<16x32xf32> to vector<16xf32>
    %4 = vector.shape_cast %3 : vector<16xf32> to vector<16x1xf32>
    %5 = arith.mulf %1, %0 : vector<16x32xf32>
    %cst_3 = arith.constant dense<0.000000e+00> : vector<16xf32>
    %6 = vector.multi_reduction <add>, %5, %cst_3 [1] : vector<16x32xf32> to vector<16xf32>
    %7 = vector.shape_cast %6 : vector<16xf32> to vector<16x1xf32>
    %cst_4 = arith.constant 9.99999996E-13 : f32
    %8 = vector.broadcast %cst_4 : f32 to vector<16x1xf32>
    %9 = arith.maximumf %4, %8 : vector<16x1xf32>
    %10 = math.rsqrt %9 : vector<16x1xf32>
    %11 = arith.mulf %7, %10 : vector<16x1xf32>
    %cst_5 = arith.constant 1.000000e+00 : f32
    %12 = vector.broadcast %cst_5 : f32 to vector<16x1xf32>
    %13 = arith.subf %12, %11 : vector<16x1xf32>
    %c0_6 = arith.constant 0 : index
    %c0_7 = arith.constant 0 : index
    %14 = vector.load %arg3[%c0_6, %c0_7] : memref<16x1xf32, #tpu.memory_space<vmem>>, vector<16x1xf32>
    tpu.vector_store %arg3[%c0_6, %c0_7], %13 {strides = array<i32>} : memref<16x1xf32, #tpu.memory_space<vmem>>, vector<16x1xf32>,
    return
  }
  func.func @transform_0(%arg0: i32) -> (i32, i32) {
    %c0_i32 = arith.constant 0 : i32
    %c0_i32_0 = arith.constant 0 : i32
    return %arg0, %c0_i32 : i32, i32
  }
  func.func @transform_1(%arg0: i32) -> (i32, i32) {
    %c0_i32 = arith.constant 0 : i32
    %c0_i32_0 = arith.constant 0 : i32
    return %arg0, %c0_i32 : i32, i32
  }
  func.func @transform_2(%arg0: i32) -> (i32, i32) {
    %c0_i32 = arith.constant 0 : i32
    %c0_i32_0 = arith.constant 0 : i32
    return %arg0, %c0_i32 : i32, i32
  }
}

</mosaic_0001>

<llo_original>
// kernel: tpu_custom_call.1
$region0: #{tpu_custom_call.1}
  #allocation0 [shape = 'u32[]', space=smem, size = 0x4, offset = 0x4, fixed_abs, tag = 'smem constant byte address 0x4 - core index']
  #allocation1 [shape = 'u32[72,128]{1,0:T(1,128)}', space=vmem, size = 0x9000, scoped, tag = 'internal scratch']
  %s0 = inlined_call_operand.hbm [shape: f32[16,32], index: 0, kind: input, shape index: {}]
  %s1 = inlined_call_operand.hbm [shape: f32[16,32], index: 1, kind: input, shape index: {}]
  %s2 = inlined_call_operand.vmem [shape: f32[16,1], index: 2, kind: output, shape index: {}]
  %s3 = sld [smem:[#allocation0]]
  $region26: #{tpu_custom_call.1} parent=0
    _
  %s5 = ssub.s32 1, %s3
  %s6 = scalar_select 0, %s5, %s3
  $region1: #{tpu_custom_call.1} parent=0
    #allocation2 [shape = 'u8[8192]{0}', space=vmem, size = 0x2000, scoped, tag = 'input window, operand 0, single buffered']
    #allocation3 [shape = 's32[1]{0}', space=sflag, size = 0x4, scoped, tag = 'scoped memory for tpu_custom_call.1']
    #allocation4 [shape = 'u8[8192]{0}', space=vmem, size = 0x2000, scoped, tag = 'input window, operand 1, single buffered']
    #allocation5 [shape = 's32[1]{0}', space=sflag, size = 0x4, scoped, tag = 'scoped memory for tpu_custom_call.1']
    %7 = vsyncpa [#allocation3], 0
    %8 = vsyncpa [#allocation5], 0
    // Predicated region
    $region2: #{tpu_custom_call.1} parent=1 // pred_check
      _
    $region3: #{tpu_custom_call.1} parent=1 // pred_check_branch
      %10 = sbr.rel (0) target = $region5
    $region4: #{tpu_custom_call.1} parent=1 // pred_region
      %12 = vsyncadd [#allocation3], 0
      %s13 = sshll.u32 %s0, 4
      %s14 = int_to_ptr.hbm [resolvable:$true] %s13
      %s15 = sshll.u32 [#allocation2], 4
      %s16 = int_to_ptr.vmem [resolvable:$true] %s15
      %21 = dma.hbm_to_vmem [thread:$0]  %s14, 256, %s16, [#allocation3], 128, 128, 8
    $region5: #{tpu_custom_call.1} parent=1 // pred_fallthru
      _
    // Predicated region
    $region6: #{tpu_custom_call.1} parent=1 // pred_check
      _
    $region7: #{tpu_custom_call.1} parent=1 // pred_check_branch
      %23 = sbr.rel (0) target = $region9
    $region8: #{tpu_custom_call.1} parent=1 // pred_region
      %25 = vsyncadd [#allocation5], 0
      %s26 = sshll.u32 %s1, 4
      %s27 = int_to_ptr.hbm [resolvable:$true] %s26
      %s28 = sshll.u32 [#allocation4], 4
      %s29 = int_to_ptr.vmem [resolvable:$true] %s28
      %34 = dma.hbm_to_vmem [thread:$0]  %s27, 256, %s29, [#allocation5], 128, 128, 8
    $region9: #{tpu_custom_call.1} parent=1 // pred_fallthru
      _
    // Predicated region
    $region10: #{tpu_custom_call.1} parent=1 // pred_check
      _
    $region11: #{tpu_custom_call.1} parent=1 // pred_check_branch
      %36 = sbr.rel (0) target = $region13
    $region12: #{tpu_custom_call.1} parent=1 // pred_region
      %38 = dma.done [#allocation3], 256
    $region13: #{tpu_custom_call.1} parent=1 // pred_fallthru
      _
    // Predicated region
    $region14: #{tpu_custom_call.1} parent=1 // pred_check
      _
    $region15: #{tpu_custom_call.1} parent=1 // pred_check_branch
      %40 = sbr.rel (0) target = $region17
    $region16: #{tpu_custom_call.1} parent=1 // pred_region
      %42 = dma.done [#allocation5], 256
    $region17: #{tpu_custom_call.1} parent=1 // pred_fallthru
      _
    %v43 = vld [vmem:[#allocation2] sm:$0xff]
    %v44 = vld [vmem:[#allocation2 + $0x8] sm:$0xff]
    %v45 = vld [vmem:[#allocation4] sm:$0xff]
    %v46 = vld [vmem:[#allocation4 + $0x8] sm:$0xff]
    %v47 = vmul.f32 %v43, %v43
    %v48 = vmul.f32 %v44, %v44
    %vm49 = vcmask 261120
    %v50 = vsel %vm49, %v47, 0.0
    %51 = vadd.xlane.f32.xlu0 %v50
    %v52 = vpop.xlane.xlu0 %51
    %v53 = vsel %vm49, %v48, 0.0
    %54 = vadd.xlane.f32.xlu0 %v53
    %v55 = vpop.xlane.xlu0 %54
    %v56 = vmul.f32 %v45, %v43
    %v57 = vmul.f32 %v46, %v44
    %v58 = vsel %vm49, %v56, 0.0
    %59 = vadd.xlane.f32.xlu0 %v58
    %v60 = vpop.xlane.xlu0 %59
    %v61 = vsel %vm49, %v57, 0.0
    %62 = vadd.xlane.f32.xlu0 %v61
    %v63 = vpop.xlane.xlu0 %62
    %v64 = vmax.f32 %v52, 1e-12
    %v65 = vmax.f32 %v55, 1e-12
    %v66 = vrsqrt.pop %v64
    %v67 = vmul.f32 %v66, %v64
    %v68 = vmul.f32 %v67, %v66
    %v69 = vmul.f32 0.5, %v68
    %v70 = vsub.f32 1.5, %v69
    %v71 = vmul.f32 %v66, %v70
    %vm72 = vweird.f32 %v64
    %vm73 = vweird.f32 %v66
    %vm74 = vmor %vm72, %vm73
    %v75 = vsel %vm74, %v66, %v71
    %v76 = vrsqrt.pop %v65
    %v77 = vmul.f32 %v76, %v65
    %v78 = vmul.f32 %v77, %v76
    %v79 = vmul.f32 0.5, %v78
    %v80 = vsub.f32 1.5, %v79
    %v81 = vmul.f32 %v76, %v80
    %vm82 = vweird.f32 %v65
    %vm83 = vweird.f32 %v76
    %vm84 = vmor %vm82, %vm83
    %v85 = vsel %vm84, %v76, %v81
    %v86 = vmul.f32 %v60, %v75
    %v87 = vmul.f32 %v63, %v85
    %v88 = vsub.f32 1.0, %v86
    %v89 = vsub.f32 1.0, %v87
    %vm90 = vcmask 7168
    %91 = vst.msk [vmem:[%s2] sm:$0xff] %vm90, %v88
    %92 = vst.msk [vmem:[%s2 + $0x8] sm:$0xff] %vm90, %v89
    // Predicated region
    $region18: #{tpu_custom_call.1} parent=1 // pred_check
      _
    $region19: #{tpu_custom_call.1} parent=1 // pred_check_branch
      %94 = sbr.rel (0) target = $region21
    $region20: #{tpu_custom_call.1} parent=1 // pred_region
      _
    $region21: #{tpu_custom_call.1} parent=1 // pred_fallthru
      _
    // Predicated region
    $region22: #{tpu_custom_call.1} parent=1 // pred_check
      _
    $region23: #{tpu_custom_call.1} parent=1 // pred_check_branch
      %96 = sbr.rel (0) target = $region25
    $region24: #{tpu_custom_call.1} parent=1 // pred_region
      _
    $region25: #{tpu_custom_call.1} parent=1 // pred_fallthru
      _
    %97 = vsyncpa [#allocation3], 1
    %98 = vsyncpa [#allocation5], 1

</llo_original>
